<compile_context>
chip_gen: v6e
topology: v6e:2x2x1
jax: 0.10.0
libtpu: 0.0.40
codegen_flags: <defaults>
</compile_context>

<pallas_src>
import jax
import jax.numpy as jnp
from jax.experimental import pallas as pl
from jax.experimental.pallas import tpu as pltpu


def encode_kernel(x_ref, params_ref, e_ref, o_ref, out_ref):
    """One batch tile: compute mean/sigma codes, interleave lanes via MXU."""
    x = x_ref[...]                  # (TB, D)
    m = params_ref[0:1, :]          # (1, D)  mean
    sp = params_ref[1:2, :]         # (1, D)  sigma + mean
    sm = params_ref[2:3, :]         # (1, D)  sigma - mean

    one = jnp.float32(1.0)
    zero = jnp.float32(0.0)

    # --- mean encoding: sequential in-place masked assignments ---
    # row_mean[row_mean > mean] = 1 ; then row_mean[row_mean < mean] = 0
    rm = jnp.where(x > m, one, x)
    rm = jnp.where(rm < m, zero, rm)

    # --- sigma encoding: sequential in-place masked assignments ---
    rs = jnp.where(x > sp, one, x)
    rs = jnp.where(rs < sm, one, rs)
    rs = jnp.where(rs < sp, zero, rs)
    rs = jnp.where(rs > sm, zero, rs)

    # Fused interleave: out[:, 2k] = rm[:, k]; out[:, 2k+1] = rs[:, k].
    # e_ref/o_ref are 0/1 (D, 2D) scatter matrices, so the matmul is exact and
    # runs on the idle MXU instead of requiring an in-kernel reshape or a
    # second XLA pass over HBM.
    out = jnp.dot(rm, e_ref[...], preferred_element_type=jnp.float32)
    out = out + jnp.dot(rs, o_ref[...], preferred_element_type=jnp.float32)
    out_ref[...] = out.astype(out_ref.dtype)


def _pick_block_b(B, D):
    # ~<=2 MiB f32 input tile, rows a multiple of 8, capped at 512 rows,
    # never larger than B rounded up to a multiple of 8.
    rows_by_vmem = max(8, (2 * 1024 * 1024) // max(4 * D, 1))
    rows_by_vmem = max(8, (rows_by_vmem // 8) * 8)
    b_up = ((B + 7) // 8) * 8
    return int(min(512, rows_by_vmem, b_up))


def pallas_encode(x, mean, sigma, block_b=None):
    """x: (B, D) f32; mean, sigma: (D,) f32 -> (B, 2*D) f32."""
    B, D = x.shape
    x = x.astype(jnp.float32)
    mean = mean.astype(jnp.float32)
    sigma = sigma.astype(jnp.float32)

    if block_b is None:
        block_b = _pick_block_b(B, D)
    grid_b = pl.cdiv(B, block_b)
    b_pad = grid_b * block_b
    if b_pad != B:
        x = jnp.pad(x, ((0, b_pad - B), (0, 0)))

    # Pack all per-feature parameters into a single 8-sublane tile:
    # row 0 = mean, row 1 = sigma + mean, row 2 = sigma - mean (rest padding).
    params = jnp.zeros((8, D), jnp.float32)
    params = params.at[0].set(mean).at[1].set(sigma + mean).at[2].set(sigma - mean)

    # 0/1 scatter matrices for the column interleave (built once in XLA).
    row = jax.lax.broadcasted_iota(jnp.int32, (D, 2 * D), 0)
    col = jax.lax.broadcasted_iota(jnp.int32, (D, 2 * D), 1)
    e_mat = (col == 2 * row).astype(jnp.float32)       # rm[:, k] -> out[:, 2k]
    o_mat = (col == 2 * row + 1).astype(jnp.float32)   # rs[:, k] -> out[:, 2k+1]

    out = pl.pallas_call(
        encode_kernel,
        out_shape=jax.ShapeDtypeStruct((b_pad, 2 * D), jnp.float32),
        grid=(grid_b,),
        in_specs=[
            pl.BlockSpec((block_b, D), lambda i: (i, 0)),   # x: tiled over batch
            pl.BlockSpec((8, D), lambda i: (0, 0)),         # params: resident
            pl.BlockSpec((D, 2 * D), lambda i: (0, 0)),     # E: resident
            pl.BlockSpec((D, 2 * D), lambda i: (0, 0)),     # O: resident
        ],
        out_specs=pl.BlockSpec((block_b, 2 * D), lambda i: (i, 0)),
        compiler_params=pltpu.CompilerParams(
            dimension_semantics=("parallel",),
            vmem_limit_bytes=32 * 1024 * 1024,
        ),
    )(x, params, e_mat, o_mat)

    return out[:B]


def reference_encode(x, mean, sigma):
    """Pure-JAX port of the PyTorch forward loop, for verification."""
    B, D = x.shape
    cols = []
    for i in range(D):
        row = x[:, i]
        m = mean[i]
        sp = sigma[i] + mean[i]
        sm = sigma[i] - mean[i]
        rm = jnp.where(row > m, 1.0, row)
        rm = jnp.where(rm < m, 0.0, rm)
        rs = jnp.where(row > sp, 1.0, row)
        rs = jnp.where(rs < sm, 1.0, rs)
        rs = jnp.where(rs < sp, 0.0, rs)
        rs = jnp.where(rs > sm, 0.0, rs)
        cols.append(jnp.stack([rm, rs], axis=1))
    return jnp.concatenate(cols, axis=1)


if __name__ == "__main__":
    key = jax.random.PRNGKey(0)
    k_init, k_x = jax.random.split(key)

    B, D = 8, 16
    # Deterministic "training" data used at __init__ to derive mean / sigma.
    input_x = jax.random.normal(k_init, (32, D), dtype=jnp.float32)
    mean = jnp.mean(input_x, axis=0)
    sigma = jnp.std(input_x, axis=0, ddof=1)   # torch.std is unbiased (ddof=1)

    x = jax.random.normal(k_x, (B, D), dtype=jnp.float32)

    out = jax.block_until_ready(pallas_encode(x, mean, sigma))
    ref = reference_encode(x, mean, sigma)

    assert out.shape == (B, 2 * D)
    assert jnp.allclose(out, ref, atol=1e-6), "mismatch vs reference"

    print("KERNEL_OK")
</pallas_src>

<mosaic_0001>
module attributes {stable_mosaic.version = 11 : i64} {
  func.func @encode_kernel(%arg0: i32, %arg1: memref<8x16xf32, #tpu.memory_space<vmem>>, %arg2: memref<8x16xf32, #tpu.memory_space<vmem>>, %arg3: memref<16x32xf32, #tpu.memory_space<vmem>>, %arg4: memref<16x32xf32, #tpu.memory_space<vmem>>, %arg5: memref<8x32xf32, #tpu.memory_space<vmem>>) attributes {dimension_semantics = [#tpu.dimension_semantics<parallel>], iteration_bounds = array<i64: 1>, scalar_prefetch = 0 : i64, scratch_operands = 0 : i64, tpu.core_type = #tpu.core_type<tc>, window_params = [{transform_indices = @transform_0, window_bounds = array<i64: 8, 16>}, {pipeline_mode = #tpu.pipeline_mode<synchronous>, transform_indices = @transform_1, window_bounds = array<i64: 8, 16>}, {pipeline_mode = #tpu.pipeline_mode<synchronous>, transform_indices = @transform_2, window_bounds = array<i64: 16, 32>}, {pipeline_mode = #tpu.pipeline_mode<synchronous>, transform_indices = @transform_3, window_bounds = array<i64: 16, 32>}, {transform_indices = @transform_4, window_bounds = array<i64: 8, 32>}]} {
    %c0 = arith.constant 0 : index
    %c0_0 = arith.constant 0 : index
    %0 = vector.load %arg1[%c0, %c0_0] : memref<8x16xf32, #tpu.memory_space<vmem>>, vector<8x16xf32>
    %c0_1 = arith.constant 0 : index
    %c0_2 = arith.constant 0 : index
    %1 = vector.load %arg2[%c0_1, %c0_2] : memref<8x16xf32, #tpu.memory_space<vmem>>, vector<1x16xf32>
    %c1 = arith.constant 1 : index
    %c0_3 = arith.constant 0 : index
    %2 = vector.load %arg2[%c1, %c0_3] : memref<8x16xf32, #tpu.memory_space<vmem>>, vector<1x16xf32>
    %c2 = arith.constant 2 : index
    %c0_4 = arith.constant 0 : index
    %3 = vector.load %arg2[%c2, %c0_4] : memref<8x16xf32, #tpu.memory_space<vmem>>, vector<1x16xf32>
    %4 = vector.broadcast %1 : vector<1x16xf32> to vector<8x16xf32>
    %5 = arith.cmpf ogt, %0, %4 : vector<8x16xf32>
    %cst = arith.constant 1.000000e+00 : f32
    %6 = vector.broadcast %cst : f32 to vector<8x16xf32>
    %7 = arith.select %5, %6, %0 : vector<8x16xi1>, vector<8x16xf32>
    %8 = vector.broadcast %1 : vector<1x16xf32> to vector<8x16xf32>
    %9 = arith.cmpf olt, %7, %8 : vector<8x16xf32>
    %cst_5 = arith.constant 0.000000e+00 : f32
    %10 = vector.broadcast %cst_5 : f32 to vector<8x16xf32>
    %11 = arith.select %9, %10, %7 : vector<8x16xi1>, vector<8x16xf32>
    %12 = vector.broadcast %2 : vector<1x16xf32> to vector<8x16xf32>
    %13 = arith.cmpf ogt, %0, %12 : vector<8x16xf32>
    %cst_6 = arith.constant 1.000000e+00 : f32
    %14 = vector.broadcast %cst_6 : f32 to vector<8x16xf32>
    %15 = arith.select %13, %14, %0 : vector<8x16xi1>, vector<8x16xf32>
    %16 = vector.broadcast %3 : vector<1x16xf32> to vector<8x16xf32>
    %17 = arith.cmpf olt, %15, %16 : vector<8x16xf32>
    %cst_7 = arith.constant 1.000000e+00 : f32
    %18 = vector.broadcast %cst_7 : f32 to vector<8x16xf32>
    %19 = arith.select %17, %18, %15 : vector<8x16xi1>, vector<8x16xf32>
    %20 = vector.broadcast %2 : vector<1x16xf32> to vector<8x16xf32>
    %21 = arith.cmpf olt, %19, %20 : vector<8x16xf32>
    %cst_8 = arith.constant 0.000000e+00 : f32
    %22 = vector.broadcast %cst_8 : f32 to vector<8x16xf32>
    %23 = arith.select %21, %22, %19 : vector<8x16xi1>, vector<8x16xf32>
    %24 = vector.broadcast %3 : vector<1x16xf32> to vector<8x16xf32>
    %25 = arith.cmpf ogt, %23, %24 : vector<8x16xf32>
    %cst_9 = arith.constant 0.000000e+00 : f32
    %26 = vector.broadcast %cst_9 : f32 to vector<8x16xf32>
    %27 = arith.select %25, %26, %23 : vector<8x16xi1>, vector<8x16xf32>
    %c0_10 = arith.constant 0 : index
    %c0_11 = arith.constant 0 : index
    %28 = vector.load %arg3[%c0_10, %c0_11] : memref<16x32xf32, #tpu.memory_space<vmem>>, vector<16x32xf32>
    %cst_12 = arith.constant dense<0.000000e+00> : vector<8x32xf32>
    %29 = tpu.matmul %11, %28, %cst_12 {dimension_numbers = #tpu.dot_dimension_numbers<[1], [0], [0], [1], [0, 0, 1, 1], [], []>} : vector<8x16xf32>, vector<16x32xf32>, vector<8x32xf32> -> vector<8x32xf32>
    %c0_13 = arith.constant 0 : index
    %c0_14 = arith.constant 0 : index
    %30 = vector.load %arg4[%c0_13, %c0_14] : memref<16x32xf32, #tpu.memory_space<vmem>>, vector<16x32xf32>
    %cst_15 = arith.constant dense<0.000000e+00> : vector<8x32xf32>
    %31 = tpu.matmul %27, %30, %cst_15 {dimension_numbers = #tpu.dot_dimension_numbers<[1], [0], [0], [1], [0, 0, 1, 1], [], []>} : vector<8x16xf32>, vector<16x32xf32>, vector<8x32xf32> -> vector<8x32xf32>
    %32 = arith.addf %29, %31 : vector<8x32xf32>
    %c0_16 = arith.constant 0 : index
    %c0_17 = arith.constant 0 : index
    %33 = vector.load %arg5[%c0_16, %c0_17] : memref<8x32xf32, #tpu.memory_space<vmem>>, vector<8x32xf32>
    tpu.vector_store %arg5[%c0_16, %c0_17], %32 {strides = array<i32>} : memref<8x32xf32, #tpu.memory_space<vmem>>, vector<8x32xf32>,
    return
  }
  func.func @transform_0(%arg0: i32) -> (i32, i32) {
    %c0_i32 = arith.constant 0 : i32
    %c0_i32_0 = arith.constant 0 : i32
    return %arg0, %c0_i32 : i32, i32
  }
  func.func @transform_1(%arg0: i32) -> (i32, i32) {
    %c0_i32 = arith.constant 0 : i32
    %c0_i32_0 = arith.constant 0 : i32
    %c0_i32_1 = arith.constant 0 : i32
    return %c0_i32, %c0_i32_0 : i32, i32
  }
  func.func @transform_2(%arg0: i32) -> (i32, i32) {
    %c0_i32 = arith.constant 0 : i32
    %c0_i32_0 = arith.constant 0 : i32
    %c0_i32_1 = arith.constant 0 : i32
    return %c0_i32, %c0_i32_0 : i32, i32
  }
  func.func @transform_3(%arg0: i32) -> (i32, i32) {
    %c0_i32 = arith.constant 0 : i32
    %c0_i32_0 = arith.constant 0 : i32
    %c0_i32_1 = arith.constant 0 : i32
    return %c0_i32, %c0_i32_0 : i32, i32
  }
  func.func @transform_4(%arg0: i32) -> (i32, i32) {
    %c0_i32 = arith.constant 0 : i32
    %c0_i32_0 = arith.constant 0 : i32
    return %arg0, %c0_i32 : i32, i32
  }
}

</mosaic_0001>

<llo_original>
// kernel: tpu_custom_call.1
$region0: #{tpu_custom_call.1}
  #allocation0 [shape = 'u32[]', space=smem, size = 0x4, offset = 0x4, fixed_abs, tag = 'smem constant byte address 0x4 - core index']
  #allocation1 [shape = 'u32[144,128]{1,0:T(1,128)}', space=vmem, size = 0x12000, scoped, tag = 'internal scratch']
  %s0 = inlined_call_operand.hbm [shape: f32[8,16], index: 0, kind: input, shape index: {}]
  %s1 = inlined_call_operand.hbm [shape: f32[8,16], index: 1, kind: input, shape index: {}]
  %s2 = inlined_call_operand.hbm [shape: f32[16,32], index: 2, kind: input, shape index: {}]
  %s3 = inlined_call_operand.hbm [shape: f32[16,32], index: 3, kind: input, shape index: {}]
  %s4 = inlined_call_operand.hbm [shape: f32[8,32], index: 4, kind: output, shape index: {}]
  %s5 = sld [smem:[#allocation0]]
  $region42: #{tpu_custom_call.1} parent=0
    _
  %s7 = ssub.s32 1, %s5
  %s8 = scalar_select 0, %s7, %s5
  $region1: #{tpu_custom_call.1} parent=0
    #allocation2 [shape = 'u8[4096]{0}', space=vmem, size = 0x1000, scoped, tag = 'input window, operand 0, single buffered']
    #allocation3 [shape = 's32[1]{0}', space=sflag, size = 0x4, scoped, tag = 'scoped memory for tpu_custom_call.1']
    #allocation4 [shape = 's32[1]{0}', space=sflag, size = 0x4, scoped, tag = 'scoped memory for tpu_custom_call.1']
    #allocation5 [shape = 'u8[4096]{0}', space=vmem, size = 0x1000, scoped, tag = 'input window, operand 1, single buffered']
    #allocation6 [shape = 's32[1]{0}', space=sflag, size = 0x4, scoped, tag = 'scoped memory for tpu_custom_call.1']
    #allocation7 [shape = 'u8[8192]{0}', space=vmem, size = 0x2000, scoped, tag = 'input window, operand 2, single buffered']
    #allocation8 [shape = 'u8[8192]{0}', space=vmem, size = 0x2000, scoped, tag = 'input window, operand 3, single buffered']
    #allocation9 [shape = 's32[1]{0}', space=sflag, size = 0x4, scoped, tag = 'scoped memory for tpu_custom_call.1']
    #allocation10 [shape = 'u8[4096]{0}', space=vmem, size = 0x1000, scoped, tag = 'output window, operand 0, single buffered']
    %9 = vsyncpa [#allocation3], 0
    %10 = vsyncpa [#allocation6], 0
    %11 = vsyncpa [#allocation9], 0
    %12 = vsyncpa [#allocation4], 0
    // Predicated region
    $region2: #{tpu_custom_call.1} parent=1 // pred_check
      _
    $region3: #{tpu_custom_call.1} parent=1 // pred_check_branch
      %14 = sbr.rel (0) target = $region5
    $region4: #{tpu_custom_call.1} parent=1 // pred_region
      %s16 = ssub.s32 128, 128
      %17 = vsyncadd [#allocation3], %s16
      %s19 = sshll.u32 [#allocation2], 4
      %s20 = int_to_ptr.vmem [resolvable:$true] %s19
      %22 = dma.hbm_to_vmem [thread:$0]  %s0, 128, %s20, [#allocation3]
    $region5: #{tpu_custom_call.1} parent=1 // pred_fallthru
      _
    // Predicated region
    $region6: #{tpu_custom_call.1} parent=1 // pred_check
      _
    $region7: #{tpu_custom_call.1} parent=1 // pred_check_branch
      %24 = sbr.rel (0) target = $region9
    $region8: #{tpu_custom_call.1} parent=1 // pred_region
      %s26 = ssub.s32 128, 128
      %27 = vsyncadd [#allocation6], %s26
      %s29 = sshll.u32 [#allocation5], 4
      %s30 = int_to_ptr.vmem [resolvable:$true] %s29
      %32 = dma.hbm_to_vmem [thread:$0]  %s1, 128, %s30, [#allocation6]
    $region9: #{tpu_custom_call.1} parent=1 // pred_fallthru
      _
    // Predicated region
    $region10: #{tpu_custom_call.1} parent=1 // pred_check
      _
    $region11: #{tpu_custom_call.1} parent=1 // pred_check_branch
      %34 = sbr.rel (0) target = $region13
    $region12: #{tpu_custom_call.1} parent=1 // pred_region
      %s36 = ssub.s32 256, 256
      %37 = vsyncadd [#allocation6], %s36
      %s38 = sshll.u32 [#allocation7], 4
      %s39 = int_to_ptr.vmem [resolvable:$true] %s38
      %44 = dma.hbm_to_vmem [thread:$0]  %s2, 256, %s39, [#allocation6], 128, 128, 8
    $region13: #{tpu_custom_call.1} parent=1 // pred_fallthru
      _
    // Predicated region
    $region14: #{tpu_custom_call.1} parent=1 // pred_check
      _
    $region15: #{tpu_custom_call.1} parent=1 // pred_check_branch
      %46 = sbr.rel (0) target = $region17
    $region16: #{tpu_custom_call.1} parent=1 // pred_region
      %s48 = ssub.s32 256, 256
      %49 = vsyncadd [#allocation9], %s48
      %s50 = sshll.u32 [#allocation8], 4
      %s51 = int_to_ptr.vmem [resolvable:$true] %s50
      %56 = dma.hbm_to_vmem [thread:$0]  %s3, 256, %s51, [#allocation9], 128, 128, 8
    $region17: #{tpu_custom_call.1} parent=1 // pred_fallthru
      _
    // Predicated region
    $region18: #{tpu_custom_call.1} parent=1 // pred_check
      _
    $region19: #{tpu_custom_call.1} parent=1 // pred_check_branch
      %58 = sbr.rel (0) target = $region21
    $region20: #{tpu_custom_call.1} parent=1 // pred_region
      %59 = dma.done [#allocation3], 128
    $region21: #{tpu_custom_call.1} parent=1 // pred_fallthru
      _
    // Predicated region
    $region22: #{tpu_custom_call.1} parent=1 // pred_check
      _
    $region23: #{tpu_custom_call.1} parent=1 // pred_check_branch
      %61 = sbr.rel (0) target = $region25
    $region24: #{tpu_custom_call.1} parent=1 // pred_region
      %62 = dma.done [#allocation6], 128
    $region25: #{tpu_custom_call.1} parent=1 // pred_fallthru
      _
    // Predicated region
    $region26: #{tpu_custom_call.1} parent=1 // pred_check
      _
    $region27: #{tpu_custom_call.1} parent=1 // pred_check_branch
      %64 = sbr.rel (0) target = $region29
    $region28: #{tpu_custom_call.1} parent=1 // pred_region
      %65 = dma.done [#allocation6], 256
    $region29: #{tpu_custom_call.1} parent=1 // pred_fallthru
      _
    // Predicated region
    $region30: #{tpu_custom_call.1} parent=1 // pred_check
      _
    $region31: #{tpu_custom_call.1} parent=1 // pred_check_branch
      %67 = sbr.rel (0) target = $region33
    $region32: #{tpu_custom_call.1} parent=1 // pred_region
      %68 = dma.done [#allocation9], 256
    $region33: #{tpu_custom_call.1} parent=1 // pred_fallthru
      _
    %v69 = vld [vmem:[#allocation2] sm:$0xff]
    %v70 = vld [vmem:[#allocation5] sm:$0x1]
    %v71 = vld [vmem:[#allocation5 + $0x1] sm:$0x1]
    %v72 = vld [vmem:[#allocation5 + $0x2] sm:$0x1]
    %v73 = vlaneseq
    %v74 = vshrl.u32 %v73, 7
    %v75 = vsub.s32 0, %v74
    %v76 = vrot.slane %v70, %v75
    %vm77 = vcmp.gt.f32.partialorder %v69, %v76
    %v78 = vsel %vm77, 1.0, %v69
    %vm79 = vcmp.lt.f32.partialorder %v78, %v76
    %v80 = vsel %vm79, 0.0, %v78
    %v81 = vlaneseq
    %v82 = vshrl.u32 %v81, 7
    %v83 = vsub.s32 0, %v82
    %v84 = vrot.slane %v71, %v83
    %vm85 = vcmp.gt.f32.partialorder %v69, %v84
    %v86 = vsel %vm85, 1.0, %v69
    %v87 = vlaneseq
    %v88 = vshrl.u32 %v87, 7
    %v89 = vsub.s32 0, %v88
    %v90 = vrot.slane %v72, %v89
    %vm91 = vcmp.lt.f32.partialorder %v86, %v90
    %v92 = vsel %vm91, 1.0, %v86
    %vm93 = vcmp.lt.f32.partialorder %v92, %v84
    %v94 = vsel %vm93, 0.0, %v92
    %vm95 = vcmp.gt.f32.partialorder %v94, %v90
    %v96 = vsel %vm95, 0.0, %v94
    %v97 = vld [vmem:[#allocation7] sm:$0xff]
    %v98 = vld [vmem:[#allocation7 + $0x8] sm:$0xff]
    %v99 = vld [vmem:[#allocation8] sm:$0xff]
    %v100 = vld [vmem:[#allocation8 + $0x8] sm:$0xff]
    %vm101 = vcmask 130048
    %v103 = vsel %vm101, %v96, 0
    %105 = vmatprep.subr.mxu0 0.0
    %106 = vmatpush1.msra.mxu0 0.0
    %107 = vmatprep.subr.mxu0 0.0
    %108 = vmatpush1.msra.mxu0 0.0
    %109 = vmatprep.subr.mxu0 0.0
    %110 = vmatpush1.msra.mxu0 0.0
    %111 = vmatprep.subr.mxu0 0.0
    %112 = vmatpush1.msra.mxu0 0.0
    %113 = vmatprep.subr.mxu0 0.0
    %114 = vmatpush1.msra.mxu0 0.0
    %115 = vmatprep.subr.mxu0 0.0
    %116 = vmatpush1.msra.mxu0 0.0
    %117 = vmatprep.subr.mxu0 0.0
    %118 = vmatpush1.msra.mxu0 0.0
    %119 = vmatprep.subr.mxu0 0.0
    %120 = vmatpush1.msra.mxu0 0.0
    %121 = vmatprep.subr.mxu0 0.0
    %122 = vmatpush1.msra.mxu0 0.0
    %123 = vmatprep.subr.mxu0 0.0
    %124 = vmatpush1.msra.mxu0 0.0
    %125 = vmatprep.subr.mxu0 0.0
    %126 = vmatpush1.msra.mxu0 0.0
    %127 = vmatprep.subr.mxu0 0.0
    %128 = vmatpush1.msra.mxu0 0.0
    %129 = vmatprep.subr.mxu0 0.0
    %130 = vmatpush1.msra.mxu0 0.0
    %131 = vmatprep.subr.mxu0 0.0
    %132 = vmatpush1.msra.mxu0 0.0
    %133 = vmatprep.subr.mxu0 0.0
    %134 = vmatpush1.msra.mxu0 %v100
    %135 = vmatprep.subr.mxu0 0.0
    %136 = vmatpush1.msra.mxu0 %v99
    %137 = vmatprep.subr.mxu0 0.0
    %138 = vmatpush2.msra.mxu0 0.0
    %139 = vmatprep.subr.mxu0 0.0
    %140 = vmatpush2.msra.mxu0 0.0
    %141 = vmatprep.subr.mxu0 0.0
    %142 = vmatpush2.msra.mxu0 0.0
    %143 = vmatprep.subr.mxu0 0.0
    %144 = vmatpush2.msra.mxu0 0.0
    %145 = vmatprep.subr.mxu0 0.0
    %146 = vmatpush2.msra.mxu0 0.0
    %147 = vmatprep.subr.mxu0 0.0
    %148 = vmatpush2.msra.mxu0 0.0
    %149 = vmatprep.subr.mxu0 0.0
    %150 = vmatpush2.msra.mxu0 0.0
    %151 = vmatprep.subr.mxu0 0.0
    %152 = vmatpush2.msra.mxu0 0.0
    %153 = vmatprep.subr.mxu0 0.0
    %154 = vmatpush2.msra.mxu0 0.0
    %155 = vmatprep.subr.mxu0 0.0
    %156 = vmatpush2.msra.mxu0 0.0
    %157 = vmatprep.subr.mxu0 0.0
    %158 = vmatpush2.msra.mxu0 0.0
    %159 = vmatprep.subr.mxu0 0.0
    %160 = vmatpush2.msra.mxu0 0.0
    %161 = vmatprep.subr.mxu0 0.0
    %162 = vmatpush2.msra.mxu0 0.0
    %163 = vmatprep.subr.mxu0 0.0
    %164 = vmatpush2.msra.mxu0 0.0
    %165 = vmatprep.subr.mxu0 0.0
    %166 = vmatpush2.msra.mxu0 0.0
    %167 = vmatprep.subr.mxu0 0.0
    %168 = vmatpush2.msra.mxu0 0.0
    %169 = vmatprep.mubr.f32.mxu0 0.0
    %170 = vmatmul.mubr.f32.gmra.mxu0 %v103
    %v171 = vpop.f32.mrf.mxu0
    %v172 = vadd.f32 0.0, %v171
    %v173 = vpop.f32.mrf.mxu0
    %174 = vdwg.mxu0
    %v176 = vsel %vm101, %v80, 0
    %178 = vmatprep.subr.mxu0 0.0
    %179 = vmatpush1.msra.mxu0 0.0
    %180 = vmatprep.subr.mxu0 0.0
    %181 = vmatpush1.msra.mxu0 0.0
    %182 = vmatprep.subr.mxu0 0.0
    %183 = vmatpush1.msra.mxu0 0.0
    %184 = vmatprep.subr.mxu0 0.0
    %185 = vmatpush1.msra.mxu0 0.0
    %186 = vmatprep.subr.mxu0 0.0
    %187 = vmatpush1.msra.mxu0 0.0
    %188 = vmatprep.subr.mxu0 0.0
    %189 = vmatpush1.msra.mxu0 0.0
    %190 = vmatprep.subr.mxu0 0.0
    %191 = vmatpush1.msra.mxu0 0.0
    %192 = vmatprep.subr.mxu0 0.0
    %193 = vmatpush1.msra.mxu0 0.0
    %194 = vmatprep.subr.mxu0 0.0
    %195 = vmatpush1.msra.mxu0 0.0
    %196 = vmatprep.subr.mxu0 0.0
    %197 = vmatpush1.msra.mxu0 0.0
    %198 = vmatprep.subr.mxu0 0.0
    %199 = vmatpush1.msra.mxu0 0.0
    %200 = vmatprep.subr.mxu0 0.0
    %201 = vmatpush1.msra.mxu0 0.0
    %202 = vmatprep.subr.mxu0 0.0
    %203 = vmatpush1.msra.mxu0 0.0
    %204 = vmatprep.subr.mxu0 0.0
    %205 = vmatpush1.msra.mxu0 0.0
    %206 = vmatprep.subr.mxu0 0.0
    %207 = vmatpush1.msra.mxu0 %v98
    %208 = vmatprep.subr.mxu0 0.0
    %209 = vmatpush1.msra.mxu0 %v97
    %210 = vmatprep.subr.mxu0 0.0
    %211 = vmatpush2.msra.mxu0 0.0
    %212 = vmatprep.subr.mxu0 0.0
    %213 = vmatpush2.msra.mxu0 0.0
    %214 = vmatprep.subr.mxu0 0.0
    %215 = vmatpush2.msra.mxu0 0.0
    %216 = vmatprep.subr.mxu0 0.0
    %217 = vmatpush2.msra.mxu0 0.0
    %218 = vmatprep.subr.mxu0 0.0
    %219 = vmatpush2.msra.mxu0 0.0
    %220 = vmatprep.subr.mxu0 0.0
    %221 = vmatpush2.msra.mxu0 0.0
    %222 = vmatprep.subr.mxu0 0.0
    %223 = vmatpush2.msra.mxu0 0.0
    %224 = vmatprep.subr.mxu0 0.0
    %225 = vmatpush2.msra.mxu0 0.0
    %226 = vmatprep.subr.mxu0 0.0
    %227 = vmatpush2.msra.mxu0 0.0
    %228 = vmatprep.subr.mxu0 0.0
    %229 = vmatpush2.msra.mxu0 0.0
    %230 = vmatprep.subr.mxu0 0.0
    %231 = vmatpush2.msra.mxu0 0.0
    %232 = vmatprep.subr.mxu0 0.0
    %233 = vmatpush2.msra.mxu0 0.0
    %234 = vmatprep.subr.mxu0 0.0
    %235 = vmatpush2.msra.mxu0 0.0
    %236 = vmatprep.subr.mxu0 0.0
    %237 = vmatpush2.msra.mxu0 0.0
    %238 = vmatprep.subr.mxu0 0.0
    %239 = vmatpush2.msra.mxu0 0.0
    %240 = vmatprep.subr.mxu0 0.0
    %241 = vmatpush2.msra.mxu0 0.0
    %242 = vmatprep.mubr.f32.mxu0 0.0
    %243 = vmatmul.mubr.f32.gmra.mxu0 %v176
    %v244 = vpop.f32.mrf.mxu0
    %v245 = vadd.f32 %v172, %v244
    %v246 = vpop.f32.mrf.mxu0
    %247 = vdwg.mxu0
    %vm248 = vcmask 261120
    %249 = vst.msk [vmem:[#allocation10] sm:$0xff] %vm248, %v245
    // Predicated region
    $region34: #{tpu_custom_call.1} parent=1 // pred_check
      _
    $region35: #{tpu_custom_call.1} parent=1 // pred_check_branch
      %251 = sbr.rel (0) target = $region37
    $region36: #{tpu_custom_call.1} parent=1 // pred_region
      %s253 = ssub.s32 128, 128
      %254 = vsyncadd [#allocation4], %s253
      %s256 = sshll.u32 [#allocation10], 4
      %s257 = int_to_ptr.vmem [resolvable:$true] %s256
      %259 = dma.vmem_to_hbm [thread:$0]  %s257, 128, %s4, [#allocation4]
    $region37: #{tpu_custom_call.1} parent=1 // pred_fallthru
      _
    // Predicated region
    $region38: #{tpu_custom_call.1} parent=1 // pred_check
      _
    $region39: #{tpu_custom_call.1} parent=1 // pred_check_branch
      %261 = sbr.rel (0) target = $region41
    $region40: #{tpu_custom_call.1} parent=1 // pred_region
      %262 = dma.done [#allocation4], 128
    $region41: #{tpu_custom_call.1} parent=1 // pred_fallthru
      _
    %263 = vsyncpa [#allocation3], 1
    %264 = vsyncpa [#allocation6], 1
    %265 = vsyncpa [#allocation9], 1
    %266 = vsyncpa [#allocation4], 1

</llo_original>
